<compile_context>
chip_gen: v6e
topology: v6e:2x2x1
jax: 0.10.0
libtpu: 0.0.40
codegen_flags: <defaults>
</compile_context>

<pallas_src>
import functools

import jax
import jax.numpy as jnp
from jax.experimental import pallas as pl
from jax.experimental.pallas import tpu as pltpu


def _round_up(x, m):
    return ((x + m - 1) // m) * m


def _make_constrainer_kernel(n_tasks, unroll_limit=32):
    """out = (losses - threshold) * sp_amp[amp_idx] * sp_phase[phase_idx]."""

    def kernel(sp_amp_ref, sp_phase_ref, thr_ref,
               amp_idx_ref, phase_idx_ref, losses_ref, out_ref):
        # sp_amp_ref / sp_phase_ref   : (n_tasks,)        f32 SMEM tables
        # thr_ref                     : (1,)              f32 SMEM scalar
        # amp_idx_ref / phase_idx_ref : (block_rows, 128) i32 dense batch tile
        # losses_ref / out_ref        : (block_rows, 128) f32 dense batch tile
        amp_idx = amp_idx_ref[...]
        phase_idx = phase_idx_ref[...]

        def select_task(j, carry):
            lam_amp, lam_phase = carry
            lam_amp = jnp.where(amp_idx == j, sp_amp_ref[j], lam_amp)
            lam_phase = jnp.where(phase_idx == j, sp_phase_ref[j], lam_phase)
            return lam_amp, lam_phase

        init = (jnp.zeros(amp_idx.shape, jnp.float32),
                jnp.zeros(amp_idx.shape, jnp.float32))
        if n_tasks <= unroll_limit:
            lam_amp, lam_phase = init
            for j in range(n_tasks):
                lam_amp, lam_phase = select_task(j, (lam_amp, lam_phase))
        else:
            lam_amp, lam_phase = jax.lax.fori_loop(0, n_tasks, select_task, init)

        out_ref[...] = (losses_ref[...] - thr_ref[0]) * (lam_amp * lam_phase)

    return kernel


def _choose_block_rows(total_rows, vmem_budget_bytes=8 << 20):
    # Per 128-lane row: ~8 double-buffered f32/i32 I/O tiles (3 in + 1 out)
    # plus ~4 live (block_rows, 128) temporaries -> 12 * 512 bytes per row.
    bytes_per_row = 12 * 128 * 4
    budget_rows = max(8, (vmem_budget_bytes // bytes_per_row) // 8 * 8)
    # Keep >= 2 grid steps whenever possible so v7x's 2 TensorCores both work.
    half_rows = max(8, _round_up(pl.cdiv(total_rows, 2), 8))
    return max(8, min(budget_rows, half_rows))


def _constrainer_pallas(sp_amp, sp_phase, amp_idx2d, phase_idx2d, losses2d,
                        threshold, block_rows):
    total_rows = losses2d.shape[0]
    n_tasks = sp_amp.shape[0]

    if block_rows is None:
        block_rows = _choose_block_rows(total_rows)
    else:
        block_rows = max(8, _round_up(int(block_rows), 8))
    if block_rows >= total_rows:
        block_rows = total_rows  # single exact-fit block (full-dim rule)
    grid = (pl.cdiv(total_rows, block_rows),)

    # Footprint-derived VMEM limit (leaves headroom on v7x's 64 MiB VMEM).
    vmem_limit = int(min(32 << 20, max(4 << 20, 12 * block_rows * 512 + (2 << 20))))

    thr = jnp.full((1,), threshold, dtype=jnp.float32)

    def batch_spec():
        return pl.BlockSpec((block_rows, 128), lambda i: (i, 0))

    def smem_spec():
        return pl.BlockSpec(memory_space=pltpu.MemorySpace.SMEM)

    return pl.pallas_call(
        _make_constrainer_kernel(n_tasks),
        out_shape=jax.ShapeDtypeStruct((total_rows, 128), jnp.float32),
        grid=grid,
        in_specs=[smem_spec(), smem_spec(), smem_spec(),
                  batch_spec(), batch_spec(), batch_spec()],
        out_specs=batch_spec(),
        compiler_params=pltpu.CompilerParams(
            dimension_semantics=("parallel",),
            vmem_limit_bytes=vmem_limit,
        ),
    )(sp_amp, sp_phase, thr, amp_idx2d, phase_idx2d, losses2d)


@functools.partial(jax.jit, static_argnames=("block_rows", "min_pallas_batch"))
def constrainer_forward(tau_amplitude, tau_phase, amplitude_idxs, phase_idxs,
                        losses, threshold=1.0, block_rows=None,
                        min_pallas_batch=4096):
    """JAX wrapper.

    tau_amplitude, tau_phase   : (n_tasks,) f32 parameters
    amplitude_idxs, phase_idxs : (B,) int
    losses                     : (B,) f32
    returns aux_loss           : (B,) f32
    """
    B = losses.shape[0]
    # softplus(tau) hoisted out of the kernel (one tiny fused XLA op per call).
    sp_amp = jax.nn.softplus(tau_amplitude.astype(jnp.float32))
    sp_phase = jax.nn.softplus(tau_phase.astype(jnp.float32))
    losses_f = losses.astype(jnp.float32)

    if B < min_pallas_batch:
        # Small-batch fast path: pallas launch + layout plumbing would dominate.
        lambdas = sp_amp[amplitude_idxs] * sp_phase[phase_idxs]
        return (losses_f - threshold) * lambdas

    amp_idx = amplitude_idxs.astype(jnp.int32)
    phase_idx = phase_idxs.astype(jnp.int32)

    b_pad = _round_up(B, 128)
    if b_pad != B:
        # Only non-128-aligned batches pay this pad (to the next multiple of 128).
        pad = (0, b_pad - B)
        amp_idx = jnp.pad(amp_idx, pad)
        phase_idx = jnp.pad(phase_idx, pad)
        losses_f = jnp.pad(losses_f, pad)

    rows = b_pad // 128
    out2d = _constrainer_pallas(
        sp_amp, sp_phase,
        amp_idx.reshape(rows, 128),
        phase_idx.reshape(rows, 128),
        losses_f.reshape(rows, 128),
        threshold, block_rows)
    return out2d.reshape(b_pad)[:B]


def constrainer_reference(tau_amplitude, tau_phase, amplitude_idxs, phase_idxs,
                          losses, threshold=1.0):
    sp = jax.nn.softplus
    lambdas = sp(tau_amplitude[amplitude_idxs]) * sp(tau_phase[phase_idxs])
    return (losses - threshold) * lambdas


if __name__ == "__main__":
    def _check(n_tasks, batch, threshold, key, *, block_rows=None,
               random_tau=False, min_pallas_batch=0):
        kt1, kt2, k1, k2, k3 = jax.random.split(key, 5)
        if random_tau:
            tau_amplitude = 1.0 + 0.5 * jax.random.normal(kt1, (n_tasks,), dtype=jnp.float32)
            tau_phase = 1.0 + 0.5 * jax.random.normal(kt2, (n_tasks,), dtype=jnp.float32)
        else:
            # nn.Parameter(torch.full((n_tasks,), 1.0)) init
            tau_amplitude = jnp.full((n_tasks,), 1.0, dtype=jnp.float32)
            tau_phase = jnp.full((n_tasks,), 1.0, dtype=jnp.float32)
        amplitude_idxs = jax.random.randint(k1, (batch,), 0, n_tasks, dtype=jnp.int32)
        phase_idxs = jax.random.randint(k2, (batch,), 0, n_tasks, dtype=jnp.int32)
        losses = jax.random.normal(k3, (batch,), dtype=jnp.float32) ** 2

        out = constrainer_forward(tau_amplitude, tau_phase, amplitude_idxs,
                                  phase_idxs, losses, threshold=threshold,
                                  block_rows=block_rows,
                                  min_pallas_batch=min_pallas_batch)
        out = jax.block_until_ready(out)
        ref = constrainer_reference(tau_amplitude, tau_phase, amplitude_idxs,
                                    phase_idxs, losses, threshold=threshold)
        assert out.shape == (batch,), (out.shape, batch)
        assert jnp.allclose(out, ref, atol=1e-5, rtol=1e-5), (out, ref)

    key = jax.random.PRNGKey(0)
    k0, k1, k2, k3 = jax.random.split(key, 4)
    # Tiny case matching the module defaults, forced through the kernel
    # (padded to a single 128-lane row, unrolled task loop).
    _check(16, 8, 1.0, k0)
    # 128-aligned batch (no pad copy), multi-step "parallel" grid, unrolled loop.
    _check(20, 2048, 0.5, k1, block_rows=8, random_tau=True)
    # Non-aligned batch (tail pad) + fori_loop task path (n_tasks > unroll limit).
    _check(33, 260, 0.25, k2, random_tau=True)
    # Default small-batch pure-XLA fast path.
    _check(16, 64, 1.0, k3, random_tau=True, min_pallas_batch=4096)

    print("KERNEL_OK")
</pallas_src>

<mosaic_0001>
module attributes {stable_mosaic.version = 11 : i64} {
  func.func @kernel(%arg0: i32, %arg1: memref<16xf32, #tpu.memory_space<smem>>, %arg2: memref<16xf32, #tpu.memory_space<smem>>, %arg3: memref<1xf32, #tpu.memory_space<smem>>, %arg4: memref<1x128xi32, #tpu.memory_space<vmem>>, %arg5: memref<1x128xi32, #tpu.memory_space<vmem>>, %arg6: memref<1x128xf32, #tpu.memory_space<vmem>>, %arg7: memref<1x128xf32, #tpu.memory_space<vmem>>) attributes {dimension_semantics = [#tpu.dimension_semantics<parallel>], iteration_bounds = array<i64: 1>, scalar_prefetch = 0 : i64, scratch_operands = 0 : i64, tpu.core_type = #tpu.core_type<tc>, window_params = [{transform_indices = @transform_0, window_bounds = array<i64: 16>}, {transform_indices = @transform_1, window_bounds = array<i64: 16>}, {transform_indices = @transform_2, window_bounds = array<i64: 1>}, {transform_indices = @transform_3, window_bounds = array<i64: 1, 128>}, {transform_indices = @transform_4, window_bounds = array<i64: 1, 128>}, {transform_indices = @transform_5, window_bounds = array<i64: 1, 128>}, {transform_indices = @transform_6, window_bounds = array<i64: 1, 128>}]} {
    %c0 = arith.constant 0 : index
    %c0_0 = arith.constant 0 : index
    %0 = vector.load %arg4[%c0, %c0_0] : memref<1x128xi32, #tpu.memory_space<vmem>>, vector<1x128xi32>
    %c0_1 = arith.constant 0 : index
    %c0_2 = arith.constant 0 : index
    %1 = vector.load %arg5[%c0_1, %c0_2] : memref<1x128xi32, #tpu.memory_space<vmem>>, vector<1x128xi32>
    %cst = arith.constant 0.000000e+00 : f32
    %2 = vector.broadcast %cst : f32 to vector<1x128xf32>
    %cst_3 = arith.constant 0.000000e+00 : f32
    %3 = vector.broadcast %cst_3 : f32 to vector<1x128xf32>
    %c0_i32 = arith.constant 0 : i32
    %4 = vector.broadcast %c0_i32 : i32 to vector<1x128xi32>
    %5 = arith.cmpi eq, %0, %4 : vector<1x128xi32>
    %c0_4 = arith.constant 0 : index
    %6 = memref.load %arg1[%c0_4] : memref<16xf32, #tpu.memory_space<smem>>
    %7 = vector.broadcast %6 : f32 to vector<1x128xf32>
    %8 = arith.select %5, %7, %2 : vector<1x128xi1>, vector<1x128xf32>
    %c0_i32_5 = arith.constant 0 : i32
    %9 = vector.broadcast %c0_i32_5 : i32 to vector<1x128xi32>
    %10 = arith.cmpi eq, %1, %9 : vector<1x128xi32>
    %c0_6 = arith.constant 0 : index
    %11 = memref.load %arg2[%c0_6] : memref<16xf32, #tpu.memory_space<smem>>
    %12 = vector.broadcast %11 : f32 to vector<1x128xf32>
    %13 = arith.select %10, %12, %3 : vector<1x128xi1>, vector<1x128xf32>
    %c1_i32 = arith.constant 1 : i32
    %14 = vector.broadcast %c1_i32 : i32 to vector<1x128xi32>
    %15 = arith.cmpi eq, %0, %14 : vector<1x128xi32>
    %c1 = arith.constant 1 : index
    %16 = memref.load %arg1[%c1] : memref<16xf32, #tpu.memory_space<smem>>
    %17 = vector.broadcast %16 : f32 to vector<1x128xf32>
    %18 = arith.select %15, %17, %8 : vector<1x128xi1>, vector<1x128xf32>
    %c1_i32_7 = arith.constant 1 : i32
    %19 = vector.broadcast %c1_i32_7 : i32 to vector<1x128xi32>
    %20 = arith.cmpi eq, %1, %19 : vector<1x128xi32>
    %c1_8 = arith.constant 1 : index
    %21 = memref.load %arg2[%c1_8] : memref<16xf32, #tpu.memory_space<smem>>
    %22 = vector.broadcast %21 : f32 to vector<1x128xf32>
    %23 = arith.select %20, %22, %13 : vector<1x128xi1>, vector<1x128xf32>
    %c2_i32 = arith.constant 2 : i32
    %24 = vector.broadcast %c2_i32 : i32 to vector<1x128xi32>
    %25 = arith.cmpi eq, %0, %24 : vector<1x128xi32>
    %c2 = arith.constant 2 : index
    %26 = memref.load %arg1[%c2] : memref<16xf32, #tpu.memory_space<smem>>
    %27 = vector.broadcast %26 : f32 to vector<1x128xf32>
    %28 = arith.select %25, %27, %18 : vector<1x128xi1>, vector<1x128xf32>
    %c2_i32_9 = arith.constant 2 : i32
    %29 = vector.broadcast %c2_i32_9 : i32 to vector<1x128xi32>
    %30 = arith.cmpi eq, %1, %29 : vector<1x128xi32>
    %c2_10 = arith.constant 2 : index
    %31 = memref.load %arg2[%c2_10] : memref<16xf32, #tpu.memory_space<smem>>
    %32 = vector.broadcast %31 : f32 to vector<1x128xf32>
    %33 = arith.select %30, %32, %23 : vector<1x128xi1>, vector<1x128xf32>
    %c3_i32 = arith.constant 3 : i32
    %34 = vector.broadcast %c3_i32 : i32 to vector<1x128xi32>
    %35 = arith.cmpi eq, %0, %34 : vector<1x128xi32>
    %c3 = arith.constant 3 : index
    %36 = memref.load %arg1[%c3] : memref<16xf32, #tpu.memory_space<smem>>
    %37 = vector.broadcast %36 : f32 to vector<1x128xf32>
    %38 = arith.select %35, %37, %28 : vector<1x128xi1>, vector<1x128xf32>
    %c3_i32_11 = arith.constant 3 : i32
    %39 = vector.broadcast %c3_i32_11 : i32 to vector<1x128xi32>
    %40 = arith.cmpi eq, %1, %39 : vector<1x128xi32>
    %c3_12 = arith.constant 3 : index
    %41 = memref.load %arg2[%c3_12] : memref<16xf32, #tpu.memory_space<smem>>
    %42 = vector.broadcast %41 : f32 to vector<1x128xf32>
    %43 = arith.select %40, %42, %33 : vector<1x128xi1>, vector<1x128xf32>
    %c4_i32 = arith.constant 4 : i32
    %44 = vector.broadcast %c4_i32 : i32 to vector<1x128xi32>
    %45 = arith.cmpi eq, %0, %44 : vector<1x128xi32>
    %c4 = arith.constant 4 : index
    %46 = memref.load %arg1[%c4] : memref<16xf32, #tpu.memory_space<smem>>
    %47 = vector.broadcast %46 : f32 to vector<1x128xf32>
    %48 = arith.select %45, %47, %38 : vector<1x128xi1>, vector<1x128xf32>
    %c4_i32_13 = arith.constant 4 : i32
    %49 = vector.broadcast %c4_i32_13 : i32 to vector<1x128xi32>
    %50 = arith.cmpi eq, %1, %49 : vector<1x128xi32>
    %c4_14 = arith.constant 4 : index
    %51 = memref.load %arg2[%c4_14] : memref<16xf32, #tpu.memory_space<smem>>
    %52 = vector.broadcast %51 : f32 to vector<1x128xf32>
    %53 = arith.select %50, %52, %43 : vector<1x128xi1>, vector<1x128xf32>
    %c5_i32 = arith.constant 5 : i32
    %54 = vector.broadcast %c5_i32 : i32 to vector<1x128xi32>
    %55 = arith.cmpi eq, %0, %54 : vector<1x128xi32>
    %c5 = arith.constant 5 : index
    %56 = memref.load %arg1[%c5] : memref<16xf32, #tpu.memory_space<smem>>
    %57 = vector.broadcast %56 : f32 to vector<1x128xf32>
    %58 = arith.select %55, %57, %48 : vector<1x128xi1>, vector<1x128xf32>
    %c5_i32_15 = arith.constant 5 : i32
    %59 = vector.broadcast %c5_i32_15 : i32 to vector<1x128xi32>
    %60 = arith.cmpi eq, %1, %59 : vector<1x128xi32>
    %c5_16 = arith.constant 5 : index
    %61 = memref.load %arg2[%c5_16] : memref<16xf32, #tpu.memory_space<smem>>
    %62 = vector.broadcast %61 : f32 to vector<1x128xf32>
    %63 = arith.select %60, %62, %53 : vector<1x128xi1>, vector<1x128xf32>
    %c6_i32 = arith.constant 6 : i32
    %64 = vector.broadcast %c6_i32 : i32 to vector<1x128xi32>
    %65 = arith.cmpi eq, %0, %64 : vector<1x128xi32>
    %c6 = arith.constant 6 : index
    %66 = memref.load %arg1[%c6] : memref<16xf32, #tpu.memory_space<smem>>
    %67 = vector.broadcast %66 : f32 to vector<1x128xf32>
    %68 = arith.select %65, %67, %58 : vector<1x128xi1>, vector<1x128xf32>
    %c6_i32_17 = arith.constant 6 : i32
    %69 = vector.broadcast %c6_i32_17 : i32 to vector<1x128xi32>
    %70 = arith.cmpi eq, %1, %69 : vector<1x128xi32>
    %c6_18 = arith.constant 6 : index
    %71 = memref.load %arg2[%c6_18] : memref<16xf32, #tpu.memory_space<smem>>
    %72 = vector.broadcast %71 : f32 to vector<1x128xf32>
    %73 = arith.select %70, %72, %63 : vector<1x128xi1>, vector<1x128xf32>
    %c7_i32 = arith.constant 7 : i32
    %74 = vector.broadcast %c7_i32 : i32 to vector<1x128xi32>
    %75 = arith.cmpi eq, %0, %74 : vector<1x128xi32>
    %c7 = arith.constant 7 : index
    %76 = memref.load %arg1[%c7] : memref<16xf32, #tpu.memory_space<smem>>
    %77 = vector.broadcast %76 : f32 to vector<1x128xf32>
    %78 = arith.select %75, %77, %68 : vector<1x128xi1>, vector<1x128xf32>
    %c7_i32_19 = arith.constant 7 : i32
    %79 = vector.broadcast %c7_i32_19 : i32 to vector<1x128xi32>
    %80 = arith.cmpi eq, %1, %79 : vector<1x128xi32>
    %c7_20 = arith.constant 7 : index
    %81 = memref.load %arg2[%c7_20] : memref<16xf32, #tpu.memory_space<smem>>
    %82 = vector.broadcast %81 : f32 to vector<1x128xf32>
    %83 = arith.select %80, %82, %73 : vector<1x128xi1>, vector<1x128xf32>
    %c8_i32 = arith.constant 8 : i32
    %84 = vector.broadcast %c8_i32 : i32 to vector<1x128xi32>
    %85 = arith.cmpi eq, %0, %84 : vector<1x128xi32>
    %c8 = arith.constant 8 : index
    %86 = memref.load %arg1[%c8] : memref<16xf32, #tpu.memory_space<smem>>
    %87 = vector.broadcast %86 : f32 to vector<1x128xf32>
    %88 = arith.select %85, %87, %78 : vector<1x128xi1>, vector<1x128xf32>
    %c8_i32_21 = arith.constant 8 : i32
    %89 = vector.broadcast %c8_i32_21 : i32 to vector<1x128xi32>
    %90 = arith.cmpi eq, %1, %89 : vector<1x128xi32>
    %c8_22 = arith.constant 8 : index
    %91 = memref.load %arg2[%c8_22] : memref<16xf32, #tpu.memory_space<smem>>
    %92 = vector.broadcast %91 : f32 to vector<1x128xf32>
    %93 = arith.select %90, %92, %83 : vector<1x128xi1>, vector<1x128xf32>
    %c9_i32 = arith.constant 9 : i32
    %94 = vector.broadcast %c9_i32 : i32 to vector<1x128xi32>
    %95 = arith.cmpi eq, %0, %94 : vector<1x128xi32>
    %c9 = arith.constant 9 : index
    %96 = memref.load %arg1[%c9] : memref<16xf32, #tpu.memory_space<smem>>
    %97 = vector.broadcast %96 : f32 to vector<1x128xf32>
    %98 = arith.select %95, %97, %88 : vector<1x128xi1>, vector<1x128xf32>
    %c9_i32_23 = arith.constant 9 : i32
    %99 = vector.broadcast %c9_i32_23 : i32 to vector<1x128xi32>
    %100 = arith.cmpi eq, %1, %99 : vector<1x128xi32>
    %c9_24 = arith.constant 9 : index
    %101 = memref.load %arg2[%c9_24] : memref<16xf32, #tpu.memory_space<smem>>
    %102 = vector.broadcast %101 : f32 to vector<1x128xf32>
    %103 = arith.select %100, %102, %93 : vector<1x128xi1>, vector<1x128xf32>
    %c10_i32 = arith.constant 10 : i32
    %104 = vector.broadcast %c10_i32 : i32 to vector<1x128xi32>
    %105 = arith.cmpi eq, %0, %104 : vector<1x128xi32>
    %c10 = arith.constant 10 : index
    %106 = memref.load %arg1[%c10] : memref<16xf32, #tpu.memory_space<smem>>
    %107 = vector.broadcast %106 : f32 to vector<1x128xf32>
    %108 = arith.select %105, %107, %98 : vector<1x128xi1>, vector<1x128xf32>
    %c10_i32_25 = arith.constant 10 : i32
    %109 = vector.broadcast %c10_i32_25 : i32 to vector<1x128xi32>
    %110 = arith.cmpi eq, %1, %109 : vector<1x128xi32>
    %c10_26 = arith.constant 10 : index
    %111 = memref.load %arg2[%c10_26] : memref<16xf32, #tpu.memory_space<smem>>
    %112 = vector.broadcast %111 : f32 to vector<1x128xf32>
    %113 = arith.select %110, %112, %103 : vector<1x128xi1>, vector<1x128xf32>
    %c11_i32 = arith.constant 11 : i32
    %114 = vector.broadcast %c11_i32 : i32 to vector<1x128xi32>
    %115 = arith.cmpi eq, %0, %114 : vector<1x128xi32>
    %c11 = arith.constant 11 : index
    %116 = memref.load %arg1[%c11] : memref<16xf32, #tpu.memory_space<smem>>
    %117 = vector.broadcast %116 : f32 to vector<1x128xf32>
    %118 = arith.select %115, %117, %108 : vector<1x128xi1>, vector<1x128xf32>
    %c11_i32_27 = arith.constant 11 : i32
    %119 = vector.broadcast %c11_i32_27 : i32 to vector<1x128xi32>
    %120 = arith.cmpi eq, %1, %119 : vector<1x128xi32>
    %c11_28 = arith.constant 11 : index
    %121 = memref.load %arg2[%c11_28] : memref<16xf32, #tpu.memory_space<smem>>
    %122 = vector.broadcast %121 : f32 to vector<1x128xf32>
    %123 = arith.select %120, %122, %113 : vector<1x128xi1>, vector<1x128xf32>
    %c12_i32 = arith.constant 12 : i32
    %124 = vector.broadcast %c12_i32 : i32 to vector<1x128xi32>
    %125 = arith.cmpi eq, %0, %124 : vector<1x128xi32>
    %c12 = arith.constant 12 : index
    %126 = memref.load %arg1[%c12] : memref<16xf32, #tpu.memory_space<smem>>
    %127 = vector.broadcast %126 : f32 to vector<1x128xf32>
    %128 = arith.select %125, %127, %118 : vector<1x128xi1>, vector<1x128xf32>
    %c12_i32_29 = arith.constant 12 : i32
    %129 = vector.broadcast %c12_i32_29 : i32 to vector<1x128xi32>
    %130 = arith.cmpi eq, %1, %129 : vector<1x128xi32>
    %c12_30 = arith.constant 12 : index
    %131 = memref.load %arg2[%c12_30] : memref<16xf32, #tpu.memory_space<smem>>
    %132 = vector.broadcast %131 : f32 to vector<1x128xf32>
    %133 = arith.select %130, %132, %123 : vector<1x128xi1>, vector<1x128xf32>
    %c13_i32 = arith.constant 13 : i32
    %134 = vector.broadcast %c13_i32 : i32 to vector<1x128xi32>
    %135 = arith.cmpi eq, %0, %134 : vector<1x128xi32>
    %c13 = arith.constant 13 : index
    %136 = memref.load %arg1[%c13] : memref<16xf32, #tpu.memory_space<smem>>
    %137 = vector.broadcast %136 : f32 to vector<1x128xf32>
    %138 = arith.select %135, %137, %128 : vector<1x128xi1>, vector<1x128xf32>
    %c13_i32_31 = arith.constant 13 : i32
    %139 = vector.broadcast %c13_i32_31 : i32 to vector<1x128xi32>
    %140 = arith.cmpi eq, %1, %139 : vector<1x128xi32>
    %c13_32 = arith.constant 13 : index
    %141 = memref.load %arg2[%c13_32] : memref<16xf32, #tpu.memory_space<smem>>
    %142 = vector.broadcast %141 : f32 to vector<1x128xf32>
    %143 = arith.select %140, %142, %133 : vector<1x128xi1>, vector<1x128xf32>
    %c14_i32 = arith.constant 14 : i32
    %144 = vector.broadcast %c14_i32 : i32 to vector<1x128xi32>
    %145 = arith.cmpi eq, %0, %144 : vector<1x128xi32>
    %c14 = arith.constant 14 : index
    %146 = memref.load %arg1[%c14] : memref<16xf32, #tpu.memory_space<smem>>
    %147 = vector.broadcast %146 : f32 to vector<1x128xf32>
    %148 = arith.select %145, %147, %138 : vector<1x128xi1>, vector<1x128xf32>
    %c14_i32_33 = arith.constant 14 : i32
    %149 = vector.broadcast %c14_i32_33 : i32 to vector<1x128xi32>
    %150 = arith.cmpi eq, %1, %149 : vector<1x128xi32>
    %c14_34 = arith.constant 14 : index
    %151 = memref.load %arg2[%c14_34] : memref<16xf32, #tpu.memory_space<smem>>
    %152 = vector.broadcast %151 : f32 to vector<1x128xf32>
    %153 = arith.select %150, %152, %143 : vector<1x128xi1>, vector<1x128xf32>
    %c15_i32 = arith.constant 15 : i32
    %154 = vector.broadcast %c15_i32 : i32 to vector<1x128xi32>
    %155 = arith.cmpi eq, %0, %154 : vector<1x128xi32>
    %c15 = arith.constant 15 : index
    %156 = memref.load %arg1[%c15] : memref<16xf32, #tpu.memory_space<smem>>
    %157 = vector.broadcast %156 : f32 to vector<1x128xf32>
    %158 = arith.select %155, %157, %148 : vector<1x128xi1>, vector<1x128xf32>
    %c15_i32_35 = arith.constant 15 : i32
    %159 = vector.broadcast %c15_i32_35 : i32 to vector<1x128xi32>
    %160 = arith.cmpi eq, %1, %159 : vector<1x128xi32>
    %c15_36 = arith.constant 15 : index
    %161 = memref.load %arg2[%c15_36] : memref<16xf32, #tpu.memory_space<smem>>
    %162 = vector.broadcast %161 : f32 to vector<1x128xf32>
    %163 = arith.select %160, %162, %153 : vector<1x128xi1>, vector<1x128xf32>
    %c0_37 = arith.constant 0 : index
    %c0_38 = arith.constant 0 : index
    %164 = vector.load %arg6[%c0_37, %c0_38] : memref<1x128xf32, #tpu.memory_space<vmem>>, vector<1x128xf32>
    %c0_39 = arith.constant 0 : index
    %165 = memref.load %arg3[%c0_39] : memref<1xf32, #tpu.memory_space<smem>>
    %166 = vector.broadcast %165 : f32 to vector<1x128xf32>
    %167 = arith.subf %164, %166 : vector<1x128xf32>
    %168 = arith.mulf %158, %163 : vector<1x128xf32>
    %169 = arith.mulf %167, %168 : vector<1x128xf32>
    %c0_40 = arith.constant 0 : index
    %c0_41 = arith.constant 0 : index
    %170 = vector.load %arg7[%c0_40, %c0_41] : memref<1x128xf32, #tpu.memory_space<vmem>>, vector<1x128xf32>
    tpu.vector_store %arg7[%c0_40, %c0_41], %169 {strides = array<i32>} : memref<1x128xf32, #tpu.memory_space<vmem>>, vector<1x128xf32>,
    return
  }
  func.func @transform_0(%arg0: i32) -> i32 {
    %c0_i32 = arith.constant 0 : i32
    %c0_i32_0 = arith.constant 0 : i32
    return %c0_i32 : i32
  }
  func.func @transform_1(%arg0: i32) -> i32 {
    %c0_i32 = arith.constant 0 : i32
    %c0_i32_0 = arith.constant 0 : i32
    return %c0_i32 : i32
  }
  func.func @transform_2(%arg0: i32) -> i32 {
    %c0_i32 = arith.constant 0 : i32
    %c0_i32_0 = arith.constant 0 : i32
    return %c0_i32 : i32
  }
  func.func @transform_3(%arg0: i32) -> (i32, i32) {
    %c0_i32 = arith.constant 0 : i32
    %c0_i32_0 = arith.constant 0 : i32
    return %arg0, %c0_i32 : i32, i32
  }
  func.func @transform_4(%arg0: i32) -> (i32, i32) {
    %c0_i32 = arith.constant 0 : i32
    %c0_i32_0 = arith.constant 0 : i32
    return %arg0, %c0_i32 : i32, i32
  }
  func.func @transform_5(%arg0: i32) -> (i32, i32) {
    %c0_i32 = arith.constant 0 : i32
    %c0_i32_0 = arith.constant 0 : i32
    return %arg0, %c0_i32 : i32, i32
  }
  func.func @transform_6(%arg0: i32) -> (i32, i32) {
    %c0_i32 = arith.constant 0 : i32
    %c0_i32_0 = arith.constant 0 : i32
    return %arg0, %c0_i32 : i32, i32
  }
}

</mosaic_0001>

<llo_original>
// kernel: constrainer_forward.1
$region0: #{constrainer_forward.1}
  #allocation0 [shape = 'u32[]', space=smem, size = 0x4, offset = 0x4, fixed_abs, tag = 'smem constant byte address 0x4 - core index']
  #allocation1 [shape = 'u32[144,128]{1,0:T(1,128)}', space=vmem, size = 0x12000, scoped, tag = 'internal scratch']
  #allocation2 [shape = 'f32[1]{0:T(128)S(6)}', space=smem, size = 0x200, scoped, tag = 'scoped memory for constrainer_forward.1']
  %s0 = inlined_call_operand.vmem [shape: f32[16], index: 0, kind: input, shape index: {}]
  %s1 = inlined_call_operand.vmem [shape: f32[16], index: 1, kind: input, shape index: {}]
  %s2 = inlined_call_operand.<no memory space> [shape: f32[1], index: 2, kind: input, shape index: {}]
  %s3 = inlined_call_operand.vmem [shape: s32[1,128], index: 3, kind: input, shape index: {}]
  %s4 = inlined_call_operand.vmem [shape: s32[1,128], index: 4, kind: input, shape index: {}]
  %s5 = inlined_call_operand.vmem [shape: f32[1,128], index: 5, kind: input, shape index: {}]
  %s6 = inlined_call_operand.vmem [shape: f32[1,128], index: 6, kind: output, shape index: {}]
  %s7 = sld [smem:[#allocation0]]
  $region42: #{constrainer_forward.1} parent=0
    _
  %s9 = ssub.s32 1, %s7
  %s10 = scalar_select 0, %s9, %s7
  %11 = sst [smem:[#allocation2]] %s2
  $region1: #{constrainer_forward.1} parent=0
    #allocation3 [shape = 'u8[512]{0}', space=smem, size = 0x200, scoped, tag = 'input window, operand 0, single buffered']
    #allocation4 [shape = 's32[1]{0}', space=sflag, size = 0x4, scoped, tag = 'scoped memory for constrainer_forward.1']
    #allocation5 [shape = 'u8[512]{0}', space=smem, size = 0x200, scoped, tag = 'input window, operand 1, single buffered']
    #allocation6 [shape = 's32[1]{0}', space=sflag, size = 0x4, scoped, tag = 'scoped memory for constrainer_forward.1']
    %12 = vsyncpa [#allocation4], 0
    %13 = vsyncpa [#allocation6], 0
    // Predicated region
    $region2: #{constrainer_forward.1} parent=1 // pred_check
      _
    $region3: #{constrainer_forward.1} parent=1 // pred_check_branch
      %15 = sbr.rel (0) target = $region5
    $region4: #{constrainer_forward.1} parent=1 // pred_region
      %s17 = ssub.s32 16, 16
      %18 = vsyncadd [#allocation4], %s17
      %s20 = sshll.u32 %s0, 4
      %s21 = int_to_ptr.vmem [resolvable:$true] %s20
      %23 = dma.vmem_to_smem %s21, 16, [#allocation3], [#allocation4]
    $region5: #{constrainer_forward.1} parent=1 // pred_fallthru
      _
    // Predicated region
    $region6: #{constrainer_forward.1} parent=1 // pred_check
      _
    $region7: #{constrainer_forward.1} parent=1 // pred_check_branch
      %25 = sbr.rel (0) target = $region9
    $region8: #{constrainer_forward.1} parent=1 // pred_region
      %s27 = ssub.s32 16, 16
      %28 = vsyncadd [#allocation6], %s27
      %s30 = sshll.u32 %s1, 4
      %s31 = int_to_ptr.vmem [resolvable:$true] %s30
      %33 = dma.vmem_to_smem %s31, 16, [#allocation5], [#allocation6]
    $region9: #{constrainer_forward.1} parent=1 // pred_fallthru
      _
    // Predicated region
    $region10: #{constrainer_forward.1} parent=1 // pred_check
      _
    $region11: #{constrainer_forward.1} parent=1 // pred_check_branch
      %35 = sbr.rel (0) target = $region13
    $region12: #{constrainer_forward.1} parent=1 // pred_region
      _
    $region13: #{constrainer_forward.1} parent=1 // pred_fallthru
      _
    // Predicated region
    $region14: #{constrainer_forward.1} parent=1 // pred_check
      _
    $region15: #{constrainer_forward.1} parent=1 // pred_check_branch
      %37 = sbr.rel (0) target = $region17
    $region16: #{constrainer_forward.1} parent=1 // pred_region
      _
    $region17: #{constrainer_forward.1} parent=1 // pred_fallthru
      _
    // Predicated region
    $region18: #{constrainer_forward.1} parent=1 // pred_check
      _
    $region19: #{constrainer_forward.1} parent=1 // pred_check_branch
      %39 = sbr.rel (0) target = $region21
    $region20: #{constrainer_forward.1} parent=1 // pred_region
      _
    $region21: #{constrainer_forward.1} parent=1 // pred_fallthru
      _
    // Predicated region
    $region22: #{constrainer_forward.1} parent=1 // pred_check
      _
    $region23: #{constrainer_forward.1} parent=1 // pred_check_branch
      %41 = sbr.rel (0) target = $region25
    $region24: #{constrainer_forward.1} parent=1 // pred_region
      _
    $region25: #{constrainer_forward.1} parent=1 // pred_fallthru
      _
    // Predicated region
    $region26: #{constrainer_forward.1} parent=1 // pred_check
      _
    $region27: #{constrainer_forward.1} parent=1 // pred_check_branch
      %43 = sbr.rel (0) target = $region29
    $region28: #{constrainer_forward.1} parent=1 // pred_region
      %44 = dma.done [#allocation4], 16
    $region29: #{constrainer_forward.1} parent=1 // pred_fallthru
      _
    // Predicated region
    $region30: #{constrainer_forward.1} parent=1 // pred_check
      _
    $region31: #{constrainer_forward.1} parent=1 // pred_check_branch
      %46 = sbr.rel (0) target = $region33
    $region32: #{constrainer_forward.1} parent=1 // pred_region
      %47 = dma.done [#allocation6], 16
    $region33: #{constrainer_forward.1} parent=1 // pred_fallthru
      _
    %48 = sfence
    %v49 = vld [vmem:[%s3] sm:$0x1]
    %v50 = vld [vmem:[%s4] sm:$0x1]
    %vm51 = vcmp.eq.s32.totalorder %v49, 0
    %s52 = sld [smem:[#allocation3]]
    %v53 = vstv %s52
    %v54 = vsel %vm51, %v53, 0.0
    %vm55 = vcmp.eq.s32.totalorder %v50, 0
    %s56 = sld [smem:[#allocation5]]
    %v57 = vstv %s56
    %v58 = vsel %vm55, %v57, 0.0
    %vm59 = vcmp.eq.s32.totalorder %v49, 1
    %s60 = sld [smem:[#allocation3 + $0x1]]
    %v61 = vstv %s60
    %v62 = vsel %vm59, %v61, %v54
    %vm63 = vcmp.eq.s32.totalorder %v50, 1
    %s64 = sld [smem:[#allocation5 + $0x1]]
    %v65 = vstv %s64
    %v66 = vsel %vm63, %v65, %v58
    %vm67 = vcmp.eq.s32.totalorder %v49, 2
    %s68 = sld [smem:[#allocation3 + $0x2]]
    %v69 = vstv %s68
    %v70 = vsel %vm67, %v69, %v62
    %vm71 = vcmp.eq.s32.totalorder %v50, 2
    %s72 = sld [smem:[#allocation5 + $0x2]]
    %v73 = vstv %s72
    %v74 = vsel %vm71, %v73, %v66
    %vm75 = vcmp.eq.s32.totalorder %v49, 3
    %s76 = sld [smem:[#allocation3 + $0x3]]
    %v77 = vstv %s76
    %v78 = vsel %vm75, %v77, %v70
    %vm79 = vcmp.eq.s32.totalorder %v50, 3
    %s80 = sld [smem:[#allocation5 + $0x3]]
    %v81 = vstv %s80
    %v82 = vsel %vm79, %v81, %v74
    %vm83 = vcmp.eq.s32.totalorder %v49, 4
    %s84 = sld [smem:[#allocation3 + $0x4]]
    %v85 = vstv %s84
    %v86 = vsel %vm83, %v85, %v78
    %vm87 = vcmp.eq.s32.totalorder %v50, 4
    %s88 = sld [smem:[#allocation5 + $0x4]]
    %v89 = vstv %s88
    %v90 = vsel %vm87, %v89, %v82
    %vm91 = vcmp.eq.s32.totalorder %v49, 5
    %s92 = sld [smem:[#allocation3 + $0x5]]
    %v93 = vstv %s92
    %v94 = vsel %vm91, %v93, %v86
    %vm95 = vcmp.eq.s32.totalorder %v50, 5
    %s96 = sld [smem:[#allocation5 + $0x5]]
    %v97 = vstv %s96
    %v98 = vsel %vm95, %v97, %v90
    %vm99 = vcmp.eq.s32.totalorder %v49, 6
    %s100 = sld [smem:[#allocation3 + $0x6]]
    %v101 = vstv %s100
    %v102 = vsel %vm99, %v101, %v94
    %vm103 = vcmp.eq.s32.totalorder %v50, 6
    %s104 = sld [smem:[#allocation5 + $0x6]]
    %v105 = vstv %s104
    %v106 = vsel %vm103, %v105, %v98
    %vm107 = vcmp.eq.s32.totalorder %v49, 7
    %s108 = sld [smem:[#allocation3 + $0x7]]
    %v109 = vstv %s108
    %v110 = vsel %vm107, %v109, %v102
    %vm111 = vcmp.eq.s32.totalorder %v50, 7
    %s112 = sld [smem:[#allocation5 + $0x7]]
    %v113 = vstv %s112
    %v114 = vsel %vm111, %v113, %v106
    %vm115 = vcmp.eq.s32.totalorder %v49, 8
    %s116 = sld [smem:[#allocation3 + $0x8]]
    %v117 = vstv %s116
    %v118 = vsel %vm115, %v117, %v110
    %vm119 = vcmp.eq.s32.totalorder %v50, 8
    %s120 = sld [smem:[#allocation5 + $0x8]]
    %v121 = vstv %s120
    %v122 = vsel %vm119, %v121, %v114
    %vm123 = vcmp.eq.s32.totalorder %v49, 9
    %s124 = sld [smem:[#allocation3 + $0x9]]
    %v125 = vstv %s124
    %v126 = vsel %vm123, %v125, %v118
    %vm127 = vcmp.eq.s32.totalorder %v50, 9
    %s128 = sld [smem:[#allocation5 + $0x9]]
    %v129 = vstv %s128
    %v130 = vsel %vm127, %v129, %v122
    %vm131 = vcmp.eq.s32.totalorder %v49, 10
    %s132 = sld [smem:[#allocation3 + $0xa]]
    %v133 = vstv %s132
    %v134 = vsel %vm131, %v133, %v126
    %vm135 = vcmp.eq.s32.totalorder %v50, 10
    %s136 = sld [smem:[#allocation5 + $0xa]]
    %v137 = vstv %s136
    %v138 = vsel %vm135, %v137, %v130
    %vm139 = vcmp.eq.s32.totalorder %v49, 11
    %s140 = sld [smem:[#allocation3 + $0xb]]
    %v141 = vstv %s140
    %v142 = vsel %vm139, %v141, %v134
    %vm143 = vcmp.eq.s32.totalorder %v50, 11
    %s144 = sld [smem:[#allocation5 + $0xb]]
    %v145 = vstv %s144
    %v146 = vsel %vm143, %v145, %v138
    %vm147 = vcmp.eq.s32.totalorder %v49, 12
    %s148 = sld [smem:[#allocation3 + $0xc]]
    %v149 = vstv %s148
    %v150 = vsel %vm147, %v149, %v142
    %vm151 = vcmp.eq.s32.totalorder %v50, 12
    %s152 = sld [smem:[#allocation5 + $0xc]]
    %v153 = vstv %s152
    %v154 = vsel %vm151, %v153, %v146
    %vm155 = vcmp.eq.s32.totalorder %v49, 13
    %s156 = sld [smem:[#allocation3 + $0xd]]
    %v157 = vstv %s156
    %v158 = vsel %vm155, %v157, %v150
    %vm159 = vcmp.eq.s32.totalorder %v50, 13
    %s160 = sld [smem:[#allocation5 + $0xd]]
    %v161 = vstv %s160
    %v162 = vsel %vm159, %v161, %v154
    %vm163 = vcmp.eq.s32.totalorder %v49, 14
    %s164 = sld [smem:[#allocation3 + $0xe]]
    %v165 = vstv %s164
    %v166 = vsel %vm163, %v165, %v158
    %vm167 = vcmp.eq.s32.totalorder %v50, 14
    %s168 = sld [smem:[#allocation5 + $0xe]]
    %v169 = vstv %s168
    %v170 = vsel %vm167, %v169, %v162
    %vm171 = vcmp.eq.s32.totalorder %v49, 15
    %s172 = sld [smem:[#allocation3 + $0xf]]
    %v173 = vstv %s172
    %v174 = vsel %vm171, %v173, %v166
    %vm175 = vcmp.eq.s32.totalorder %v50, 15
    %s176 = sld [smem:[#allocation5 + $0xf]]
    %v177 = vstv %s176
    %v178 = vsel %vm175, %v177, %v170
    %v179 = vld [vmem:[%s5] sm:$0x1]
    %s180 = sld [smem:[#allocation2]]
    %v181 = vstv %s180
    %v182 = vsub.f32 %v179, %v181
    %v183 = vmul.f32 %v174, %v178
    %v184 = vmul.f32 %v182, %v183
    %185 = vst [vmem:[%s6] sm:$0x1] %v184
    // Predicated region
    $region34: #{constrainer_forward.1} parent=1 // pred_check
      _
    $region35: #{constrainer_forward.1} parent=1 // pred_check_branch
      %187 = sbr.rel (0) target = $region37
    $region36: #{constrainer_forward.1} parent=1 // pred_region
      _
    $region37: #{constrainer_forward.1} parent=1 // pred_fallthru
      _
    // Predicated region
    $region38: #{constrainer_forward.1} parent=1 // pred_check
      _
    $region39: #{constrainer_forward.1} parent=1 // pred_check_branch
      %189 = sbr.rel (0) target = $region41
    $region40: #{constrainer_forward.1} parent=1 // pred_region
      _
    $region41: #{constrainer_forward.1} parent=1 // pred_fallthru
      _
    %190 = vsyncpa [#allocation4], 1
    %191 = vsyncpa [#allocation6], 1

</llo_original>
